<compile_context>
chip_gen: v6e
topology: v6e:2x2x1
jax: 0.10.0
libtpu: 0.0.40
codegen_flags: <defaults>
</compile_context>

<pallas_src>
import jax
import jax.numpy as jnp
from jax.experimental import pallas as pl
from jax.experimental.pallas import tpu as pltpu


def _copy_kernel(x_ref, o_ref):
    # Input/output blocks have identical shapes -> pure tile copy.
    o_ref[...] = x_ref[...]


def _slice_copy_kernel(x_ref, o_ref):
    # Fallback for tiny / non-lane-aligned lengths: drop the tail in-kernel.
    o_ref[...] = x_ref[:, : o_ref.shape[-1]]


def _round_up(x: int, m: int) -> int:
    return ((x + m - 1) // m) * m


def chomp1d(x: jax.Array, chomp_size: int) -> jax.Array:
    """Equivalent of PyTorch Chomp1d(chomp_size): x[..., :-chomp_size]."""
    if chomp_size <= 0:
        return x

    *lead, l = x.shape
    l_out = l - chomp_size
    assert l_out > 0, "chomp_size must be smaller than the trailing dimension"

    rows = 1
    for d in lead:
        rows *= d
    x2 = x.reshape(rows, l)
    itemsize = jnp.dtype(x.dtype).itemsize

    if l_out >= 128:
        # ---- performance path: lane-dense tiles, no tail read -------------
        l_tile = min(_round_up(l_out, 128), 2048)          # multiple of 128
        target_bytes = 2 * 1024 * 1024                     # ~2 MiB per block
        r_cap = max(8, (target_bytes // (l_tile * itemsize)) // 8 * 8)
        r_tile = min(_round_up(rows, 8), r_cap, 512)       # multiple of 8

        grid = (pl.cdiv(rows, r_tile), pl.cdiv(l_out, l_tile))
        out2 = pl.pallas_call(
            _copy_kernel,
            out_shape=jax.ShapeDtypeStruct((rows, l_out), x.dtype),
            grid_spec=pltpu.PrefetchScalarGridSpec(
                num_scalar_prefetch=0,
                grid=grid,
                # Same block shape & index_map for input and output: the
                # chomped tail columns are never brought into VMEM (only the
                # final ragged block over-reads < l_tile columns).
                in_specs=[pl.BlockSpec((r_tile, l_tile), lambda i, j: (i, j))],
                out_specs=pl.BlockSpec((r_tile, l_tile), lambda i, j: (i, j)),
            ),
            compiler_params=pltpu.CompilerParams(
                dimension_semantics=("parallel", "parallel"),
            ),
        )(x2)
    else:
        # ---- tiny-length fallback ------------------------------------------
        r_tile = rows if rows <= 8 else min(_round_up(rows, 8), 512)
        grid = (pl.cdiv(rows, r_tile),)
        out2 = pl.pallas_call(
            _slice_copy_kernel,
            out_shape=jax.ShapeDtypeStruct((rows, l_out), x.dtype),
            grid_spec=pltpu.PrefetchScalarGridSpec(
                num_scalar_prefetch=0,
                grid=grid,
                in_specs=[pl.BlockSpec((r_tile, l), lambda i: (i, 0))],
                out_specs=pl.BlockSpec((r_tile, l_out), lambda i: (i, 0)),
            ),
            compiler_params=pltpu.CompilerParams(
                dimension_semantics=("parallel",),
            ),
        )(x2)

    return out2.reshape(*lead, l_out)


if __name__ == "__main__":
    key = jax.random.PRNGKey(0)

    # Small shape consistent with the module: (batch=2, channels=4, length=16).
    x = jax.random.normal(key, (2, 4, 16), dtype=jnp.float32)
    chomp_size = 3
    out = jax.block_until_ready(chomp1d(x, chomp_size))
    ref = x[..., :-chomp_size]
    assert out.shape == ref.shape, (out.shape, ref.shape)
    assert jnp.array_equal(out, ref), "mismatch vs. reference slice (small path)"

    # Also exercise the lane-dense performance path (L_out >= 128).
    x_big = jax.random.normal(jax.random.PRNGKey(1), (2, 64, 512), dtype=jnp.float32)
    out_big = jax.block_until_ready(chomp1d(x_big, 5))
    ref_big = x_big[..., :-5]
    assert out_big.shape == ref_big.shape, (out_big.shape, ref_big.shape)
    assert jnp.array_equal(out_big, ref_big), "mismatch vs. reference slice (tiled path)"

    print("KERNEL_OK")
</pallas_src>

<mosaic_0001>
module attributes {stable_mosaic.version = 11 : i64} {
  func.func @_slice_copy_kernel(%arg0: i32, %arg1: memref<8x16xf32, #tpu.memory_space<vmem>>, %arg2: memref<8x13xf32, #tpu.memory_space<vmem>>) attributes {dimension_semantics = [#tpu.dimension_semantics<parallel>], iteration_bounds = array<i64: 1>, scalar_prefetch = 0 : i64, scratch_operands = 0 : i64, tpu.core_type = #tpu.core_type<tc>, window_params = [{transform_indices = @transform_0, window_bounds = array<i64: 8, 16>}, {transform_indices = @transform_1, window_bounds = array<i64: 8, 13>}]} {
    %c0 = arith.constant 0 : index
    %c0_0 = arith.constant 0 : index
    %0 = vector.load %arg1[%c0, %c0_0] : memref<8x16xf32, #tpu.memory_space<vmem>>, vector<8x13xf32>
    %c0_1 = arith.constant 0 : index
    %c0_2 = arith.constant 0 : index
    %1 = vector.load %arg2[%c0_1, %c0_2] : memref<8x13xf32, #tpu.memory_space<vmem>>, vector<8x13xf32>
    tpu.vector_store %arg2[%c0_1, %c0_2], %0 {strides = array<i32>} : memref<8x13xf32, #tpu.memory_space<vmem>>, vector<8x13xf32>,
    return
  }
  func.func @transform_0(%arg0: i32) -> (i32, i32) {
    %c0_i32 = arith.constant 0 : i32
    %c0_i32_0 = arith.constant 0 : i32
    return %arg0, %c0_i32 : i32, i32
  }
  func.func @transform_1(%arg0: i32) -> (i32, i32) {
    %c0_i32 = arith.constant 0 : i32
    %c0_i32_0 = arith.constant 0 : i32
    return %arg0, %c0_i32 : i32, i32
  }
}

</mosaic_0001>

<llo_original>
// kernel: tpu_custom_call.1
$region0: #{tpu_custom_call.1}
  #allocation0 [shape = 'u32[]', space=smem, size = 0x4, offset = 0x4, fixed_abs, tag = 'smem constant byte address 0x4 - core index']
  #allocation1 [shape = 'u32[144,128]{1,0:T(1,128)}', space=vmem, size = 0x12000, scoped, tag = 'internal scratch']
  %s0 = inlined_call_operand.hbm [shape: f32[8,16], index: 0, kind: input, shape index: {}]
  %s1 = inlined_call_operand.hbm [shape: f32[8,13], index: 1, kind: output, shape index: {}]
  %s2 = sld [smem:[#allocation0]]
  $region18: #{tpu_custom_call.1} parent=0
    _
  %s4 = ssub.s32 1, %s2
  %s5 = scalar_select 0, %s4, %s2
  $region1: #{tpu_custom_call.1} parent=0
    #allocation2 [shape = 'u8[4096]{0}', space=vmem, size = 0x1000, scoped, tag = 'input window, operand 0, single buffered']
    #allocation3 [shape = 's32[1]{0}', space=sflag, size = 0x4, scoped, tag = 'scoped memory for tpu_custom_call.1']
    #allocation4 [shape = 's32[1]{0}', space=sflag, size = 0x4, scoped, tag = 'scoped memory for tpu_custom_call.1']
    #allocation5 [shape = 'u8[4096]{0}', space=vmem, size = 0x1000, scoped, tag = 'output window, operand 0, single buffered']
    %6 = vsyncpa [#allocation3], 0
    %7 = vsyncpa [#allocation4], 0
    // Predicated region
    $region2: #{tpu_custom_call.1} parent=1 // pred_check
      _
    $region3: #{tpu_custom_call.1} parent=1 // pred_check_branch
      %9 = sbr.rel (0) target = $region5
    $region4: #{tpu_custom_call.1} parent=1 // pred_region
      %s11 = ssub.s32 128, 128
      %12 = vsyncadd [#allocation3], %s11
      %s14 = sshll.u32 [#allocation2], 4
      %s15 = int_to_ptr.vmem [resolvable:$true] %s14
      %17 = dma.hbm_to_vmem [thread:$0]  %s0, 128, %s15, [#allocation3]
    $region5: #{tpu_custom_call.1} parent=1 // pred_fallthru
      _
    // Predicated region
    $region6: #{tpu_custom_call.1} parent=1 // pred_check
      _
    $region7: #{tpu_custom_call.1} parent=1 // pred_check_branch
      %19 = sbr.rel (0) target = $region9
    $region8: #{tpu_custom_call.1} parent=1 // pred_region
      %20 = dma.done [#allocation3], 128
    $region9: #{tpu_custom_call.1} parent=1 // pred_fallthru
      _
    %v21 = vld [vmem:[#allocation2] sm:$0xff]
    %vm22 = vcmask 105472
    %23 = vst.msk [vmem:[#allocation5] sm:$0xff] %vm22, %v21
    // Predicated region
    $region10: #{tpu_custom_call.1} parent=1 // pred_check
      _
    $region11: #{tpu_custom_call.1} parent=1 // pred_check_branch
      %25 = sbr.rel (0) target = $region13
    $region12: #{tpu_custom_call.1} parent=1 // pred_region
      %s27 = ssub.s32 128, 128
      %28 = vsyncadd [#allocation4], %s27
      %s30 = sshll.u32 [#allocation5], 4
      %s31 = int_to_ptr.vmem [resolvable:$true] %s30
      %33 = dma.vmem_to_hbm [thread:$0]  %s31, 128, %s1, [#allocation4]
    $region13: #{tpu_custom_call.1} parent=1 // pred_fallthru
      _
    // Predicated region
    $region14: #{tpu_custom_call.1} parent=1 // pred_check
      _
    $region15: #{tpu_custom_call.1} parent=1 // pred_check_branch
      %35 = sbr.rel (0) target = $region17
    $region16: #{tpu_custom_call.1} parent=1 // pred_region
      %36 = dma.done [#allocation4], 128
    $region17: #{tpu_custom_call.1} parent=1 // pred_fallthru
      _
    %37 = vsyncpa [#allocation3], 1
    %38 = vsyncpa [#allocation4], 1

</llo_original>
